<compile_context>
chip_gen: v5e
topology: v5e:2x2
jax: 0.10.0
libtpu: 0.0.40
codegen_flags: <defaults>
</compile_context>

<pallas_src>
import math
import functools

import jax
import jax.numpy as jnp
from jax.experimental import pallas as pl
from jax.experimental.pallas import tpu as pltpu


def _causal_attn_kernel(x_ref, wq_ref, wk_ref, wv_ref, bq_ref, bk_ref, bv_ref,
                        wo_ref, bo_ref, o_ref, *, n_head: int):
    """One grid step == one batch element.

    x_ref        : (T, C)      activations (compute dtype: f32 or bf16)
    wq/wk/wv_ref : (H, C, hd)  per-head projection weights (compute dtype)
    bq/bk/bv_ref : (H, 1, hd)  f32 biases
    wo_ref       : (H, hd, C)  per-head output-projection weights
    bo_ref       : (1, C)      f32 bias
    o_ref        : (T, C)      f32 output
    """
    T, C = x_ref.shape
    H = n_head
    hd = C // H
    scale = 1.0 / math.sqrt(hd)
    mxu_dtype = x_ref.dtype            # bf16 on v6e/v7x, f32 otherwise

    # Broadcast activations across a leading head axis once (hoisted) so every
    # matmul below is a single leading-batch dot_general (no per-head loop,
    # no lane slicing, no .at[].set).
    xh = jnp.broadcast_to(x_ref[...][None], (H, T, C))            # (H, T, C)

    # --- QKV projection: batched over heads, f32 accumulation ---
    q = jnp.einsum('htc,hcd->htd', xh, wq_ref[...],
                   preferred_element_type=jnp.float32) + bq_ref[...]
    k = jnp.einsum('htc,hcd->htd', xh, wk_ref[...],
                   preferred_element_type=jnp.float32) + bk_ref[...]
    v = jnp.einsum('htc,hcd->htd', xh, wv_ref[...],
                   preferred_element_type=jnp.float32) + bv_ref[...]

    # Scale q (T*hd multiplies) instead of the (T,T) score matrix.
    q = q * scale

    # --- scores for all heads in one batched matmul: (H, T, T) ---
    att = jnp.einsum('hqd,hkd->hqk', q.astype(mxu_dtype), k.astype(mxu_dtype),
                     preferred_element_type=jnp.float32)

    # Additive causal bias, built once, applied to all heads at once.
    row = jax.lax.broadcasted_iota(jnp.int32, (T, T), 0)
    col = jax.lax.broadcasted_iota(jnp.int32, (T, T), 1)
    causal_bias = jnp.where(row >= col, 0.0, -1e30).astype(jnp.float32)
    att = att + causal_bias[None, :, :]

    # Numerically stable softmax (f32); reciprocal goes to the EUP slot.
    m = jnp.max(att, axis=-1, keepdims=True)
    e = jnp.exp(att - m)
    s = jnp.sum(e, axis=-1, keepdims=True)
    p = e * pl.reciprocal(s, approx=True)

    # --- attention-weighted values, all heads batched: (H, T, hd) ---
    y = jnp.einsum('hqk,hkd->hqd', p.astype(mxu_dtype), v.astype(mxu_dtype),
                   preferred_element_type=jnp.float32)

    # --- output projection: per-head partial products, summed over heads ---
    # (mathematically identical to concat-heads @ w_proj, but avoids any
    #  in-kernel head-concat relayout)
    out_h = jnp.einsum('htd,hdc->htc', y.astype(mxu_dtype), wo_ref[...],
                       preferred_element_type=jnp.float32)        # (H, T, C)
    out = jnp.sum(out_h, axis=0) + bo_ref[...]                    # (T, C)

    o_ref[...] = out.astype(o_ref.dtype)
    # TODO(synk): attn_dropout / resid_dropout omitted (p = 0.0 / eval mode).


@functools.partial(jax.jit, static_argnames=("n_head", "compute_dtype"))
def causal_self_attention(x, w_attn, b_attn, w_proj, b_proj, *, n_head: int,
                          compute_dtype=jnp.float32):
    """Fused causal self-attention forward (dropout p = 0).

    x       : (B, T, C) float32
    w_attn  : (C, 3C)   (= torch c_attn.weight.T)
    b_attn  : (3C,)
    w_proj  : (C, C)    (= torch c_proj.weight.T)
    b_proj  : (C,)
    compute_dtype: dtype fed to the MXU (jnp.float32, or jnp.bfloat16 on
                   v6e/v7x).  Softmax and all accumulation stay in f32.
    Returns (B, T, C) float32.
    """
    B, T, C = x.shape
    H = n_head
    assert C % H == 0
    hd = C // H

    # ---- wrapper-side (XLA) weight re-layout to head-major form ----
    wq = w_attn[:, 0 * C:1 * C].reshape(C, H, hd).transpose(1, 0, 2)  # (H,C,hd)
    wk = w_attn[:, 1 * C:2 * C].reshape(C, H, hd).transpose(1, 0, 2)
    wv = w_attn[:, 2 * C:3 * C].reshape(C, H, hd).transpose(1, 0, 2)
    bq = b_attn[0 * C:1 * C].reshape(H, 1, hd).astype(jnp.float32)
    bk = b_attn[1 * C:2 * C].reshape(H, 1, hd).astype(jnp.float32)
    bv = b_attn[2 * C:3 * C].reshape(H, 1, hd).astype(jnp.float32)
    wo = w_proj.reshape(H, hd, C)                                     # (H,hd,C)
    bo = b_proj.reshape(1, C).astype(jnp.float32)

    # bf16 MXU operands halve HBM->VMEM DMA bytes on v6e/v7x; accum stays f32.
    xc = x.astype(compute_dtype)
    wq = wq.astype(compute_dtype)
    wk = wk.astype(compute_dtype)
    wv = wv.astype(compute_dtype)
    wo = wo.astype(compute_dtype)

    kernel = functools.partial(_causal_attn_kernel, n_head=H)

    grid_spec = pltpu.PrefetchScalarGridSpec(
        num_scalar_prefetch=0,
        grid=(B,),
        in_specs=[
            pl.BlockSpec((None, T, C), lambda b: (b, 0, 0)),   # x (squeezed B)
            pl.BlockSpec((H, C, hd), lambda b: (0, 0, 0)),     # wq
            pl.BlockSpec((H, C, hd), lambda b: (0, 0, 0)),     # wk
            pl.BlockSpec((H, C, hd), lambda b: (0, 0, 0)),     # wv
            pl.BlockSpec((H, 1, hd), lambda b: (0, 0, 0)),     # bq
            pl.BlockSpec((H, 1, hd), lambda b: (0, 0, 0)),     # bk
            pl.BlockSpec((H, 1, hd), lambda b: (0, 0, 0)),     # bv
            pl.BlockSpec((H, hd, C), lambda b: (0, 0, 0)),     # wo
            pl.BlockSpec((1, C), lambda b: (0, 0)),            # bo
        ],
        out_specs=pl.BlockSpec((None, T, C), lambda b: (b, 0, 0)),
    )

    return pl.pallas_call(
        kernel,
        out_shape=jax.ShapeDtypeStruct((B, T, C), jnp.float32),
        grid_spec=grid_spec,
        compiler_params=pltpu.CompilerParams(
            dimension_semantics=("parallel",)),   # shards batch steps over v7x's 2 TCs
    )(xc, wq, wk, wv, bq, bk, bv, wo, bo)


def causal_self_attention_ref(x, w_attn, b_attn, w_proj, b_proj, *, n_head: int):
    """Pure-JAX reference mirroring the PyTorch forward (dropout p=0)."""
    B, T, C = x.shape
    hd = C // n_head
    qkv = x @ w_attn + b_attn
    q, k, v = jnp.split(qkv, 3, axis=-1)
    q = q.reshape(B, T, n_head, hd).transpose(0, 2, 1, 3)
    k = k.reshape(B, T, n_head, hd).transpose(0, 2, 1, 3)
    v = v.reshape(B, T, n_head, hd).transpose(0, 2, 1, 3)
    att = jnp.einsum("bhqd,bhkd->bhqk", q, k) * (1.0 / math.sqrt(hd))
    mask = jnp.tril(jnp.ones((T, T), dtype=bool))
    att = jnp.where(mask[None, None], att, -jnp.inf)
    att = jax.nn.softmax(att, axis=-1)
    y = jnp.einsum("bhqk,bhkd->bhqd", att, v)
    y = y.transpose(0, 2, 1, 3).reshape(B, T, C)
    return y @ w_proj + b_proj


if __name__ == "__main__":
    # config: d_model=32, n_head=4, context_size=8, bias=True, dropout=0.0
    B, T, C, n_head = 2, 8, 32, 4

    key = jax.random.PRNGKey(0)
    kx, k1, k2, k3, k4 = jax.random.split(key, 5)

    x = jax.random.normal(kx, (B, T, C), dtype=jnp.float32)
    # Deterministic synthetic parameters (stand-in for nn.Linear weights).
    w_attn = 0.02 * jax.random.normal(k1, (C, 3 * C), dtype=jnp.float32)
    b_attn = 0.01 * jax.random.normal(k2, (3 * C,), dtype=jnp.float32)
    w_proj = 0.02 * jax.random.normal(k3, (C, C), dtype=jnp.float32)
    b_proj = 0.01 * jax.random.normal(k4, (C,), dtype=jnp.float32)

    ref = causal_self_attention_ref(x, w_attn, b_attn, w_proj, b_proj,
                                    n_head=n_head)

    # f32 path (exact semantics, v5e-friendly).
    out = causal_self_attention(x, w_attn, b_attn, w_proj, b_proj,
                                n_head=n_head, compute_dtype=jnp.float32)
    out = jax.block_until_ready(out)
    assert out.shape == (B, T, C)
    assert jnp.allclose(out, ref, atol=2e-3, rtol=2e-3), "f32 mismatch vs reference"

    # bf16 MXU-operand path (v6e / v7x fast path); softmax & accum remain f32.
    out_bf16 = causal_self_attention(x, w_attn, b_attn, w_proj, b_proj,
                                     n_head=n_head, compute_dtype=jnp.bfloat16)
    out_bf16 = jax.block_until_ready(out_bf16)
    assert jnp.allclose(out_bf16, ref, atol=5e-2, rtol=5e-2), "bf16 mismatch vs reference"

    print("KERNEL_OK")
</pallas_src>

<mosaic_0001>
module attributes {stable_mosaic.version = 11 : i64} {
  func.func @_causal_attn_kernel(%arg0: i32, %arg1: memref<1x8x32xf32, #tpu.memory_space<vmem>>, %arg2: memref<4x32x8xf32, #tpu.memory_space<vmem>>, %arg3: memref<4x32x8xf32, #tpu.memory_space<vmem>>, %arg4: memref<4x32x8xf32, #tpu.memory_space<vmem>>, %arg5: memref<4x1x8xf32, #tpu.memory_space<vmem>>, %arg6: memref<4x1x8xf32, #tpu.memory_space<vmem>>, %arg7: memref<4x1x8xf32, #tpu.memory_space<vmem>>, %arg8: memref<4x8x32xf32, #tpu.memory_space<vmem>>, %arg9: memref<1x32xf32, #tpu.memory_space<vmem>>, %arg10: memref<1x8x32xf32, #tpu.memory_space<vmem>>) attributes {dimension_semantics = [#tpu.dimension_semantics<parallel>], iteration_bounds = array<i64: 2>, scalar_prefetch = 0 : i64, scratch_operands = 0 : i64, tpu.core_type = #tpu.core_type<tc>, window_params = [{transform_indices = @transform_0, window_bounds = array<i64: 1, 8, 32>}, {pipeline_mode = #tpu.pipeline_mode<synchronous>, transform_indices = @transform_1, window_bounds = array<i64: 4, 32, 8>}, {pipeline_mode = #tpu.pipeline_mode<synchronous>, transform_indices = @transform_2, window_bounds = array<i64: 4, 32, 8>}, {pipeline_mode = #tpu.pipeline_mode<synchronous>, transform_indices = @transform_3, window_bounds = array<i64: 4, 32, 8>}, {pipeline_mode = #tpu.pipeline_mode<synchronous>, transform_indices = @transform_4, window_bounds = array<i64: 4, 1, 8>}, {pipeline_mode = #tpu.pipeline_mode<synchronous>, transform_indices = @transform_5, window_bounds = array<i64: 4, 1, 8>}, {pipeline_mode = #tpu.pipeline_mode<synchronous>, transform_indices = @transform_6, window_bounds = array<i64: 4, 1, 8>}, {pipeline_mode = #tpu.pipeline_mode<synchronous>, transform_indices = @transform_7, window_bounds = array<i64: 4, 8, 32>}, {pipeline_mode = #tpu.pipeline_mode<synchronous>, transform_indices = @transform_8, window_bounds = array<i64: 1, 32>}, {transform_indices = @transform_9, window_bounds = array<i64: 1, 8, 32>}]} {
    %c0 = arith.constant 0 : index
    %c0_0 = arith.constant 0 : index
    %c0_1 = arith.constant 0 : index
    %0 = vector.load %arg1[%c0, %c0_0, %c0_1] : memref<1x8x32xf32, #tpu.memory_space<vmem>>, vector<1x8x32xf32>
    %1 = vector.shape_cast %0 : vector<1x8x32xf32> to vector<8x32xf32>
    %2 = vector.shape_cast %1 : vector<8x32xf32> to vector<1x8x32xf32>
    %3 = vector.shape_cast %2 : vector<1x8x32xf32> to vector<1x8x32xf32>
    %4 = vector.broadcast %3 : vector<1x8x32xf32> to vector<4x8x32xf32>
    %c0_2 = arith.constant 0 : index
    %c0_3 = arith.constant 0 : index
    %c0_4 = arith.constant 0 : index
    %5 = vector.load %arg2[%c0_2, %c0_3, %c0_4] : memref<4x32x8xf32, #tpu.memory_space<vmem>>, vector<4x32x8xf32>
    "tpu.trace_start"() <{level = 10 : i32, message = "htc,hcd->htd"}> : () -> ()
    %cst = arith.constant dense<0.000000e+00> : vector<4x8x8xf32>
    %6 = tpu.matmul %4, %5, %cst {dimension_numbers = #tpu.dot_dimension_numbers<[2], [1], [1], [2], [0, 0, 0, 1, 1, 2], [0], [0]>} : vector<4x8x32xf32>, vector<4x32x8xf32>, vector<4x8x8xf32> -> vector<4x8x8xf32>
    "tpu.trace_stop"() : () -> ()
    %c0_5 = arith.constant 0 : index
    %c0_6 = arith.constant 0 : index
    %c0_7 = arith.constant 0 : index
    %7 = vector.load %arg5[%c0_5, %c0_6, %c0_7] : memref<4x1x8xf32, #tpu.memory_space<vmem>>, vector<4x1x8xf32>
    %8 = vector.broadcast %7 : vector<4x1x8xf32> to vector<4x8x8xf32>
    %9 = arith.addf %6, %8 : vector<4x8x8xf32>
    %c0_8 = arith.constant 0 : index
    %c0_9 = arith.constant 0 : index
    %c0_10 = arith.constant 0 : index
    %10 = vector.load %arg3[%c0_8, %c0_9, %c0_10] : memref<4x32x8xf32, #tpu.memory_space<vmem>>, vector<4x32x8xf32>
    "tpu.trace_start"() <{level = 10 : i32, message = "htc,hcd->htd"}> : () -> ()
    %cst_11 = arith.constant dense<0.000000e+00> : vector<4x8x8xf32>
    %11 = tpu.matmul %4, %10, %cst_11 {dimension_numbers = #tpu.dot_dimension_numbers<[2], [1], [1], [2], [0, 0, 0, 1, 1, 2], [0], [0]>} : vector<4x8x32xf32>, vector<4x32x8xf32>, vector<4x8x8xf32> -> vector<4x8x8xf32>
    "tpu.trace_stop"() : () -> ()
    %c0_12 = arith.constant 0 : index
    %c0_13 = arith.constant 0 : index
    %c0_14 = arith.constant 0 : index
    %12 = vector.load %arg6[%c0_12, %c0_13, %c0_14] : memref<4x1x8xf32, #tpu.memory_space<vmem>>, vector<4x1x8xf32>
    %13 = vector.broadcast %12 : vector<4x1x8xf32> to vector<4x8x8xf32>
    %14 = arith.addf %11, %13 : vector<4x8x8xf32>
    %c0_15 = arith.constant 0 : index
    %c0_16 = arith.constant 0 : index
    %c0_17 = arith.constant 0 : index
    %15 = vector.load %arg4[%c0_15, %c0_16, %c0_17] : memref<4x32x8xf32, #tpu.memory_space<vmem>>, vector<4x32x8xf32>
    "tpu.trace_start"() <{level = 10 : i32, message = "htc,hcd->htd"}> : () -> ()
    %cst_18 = arith.constant dense<0.000000e+00> : vector<4x8x8xf32>
    %16 = tpu.matmul %4, %15, %cst_18 {dimension_numbers = #tpu.dot_dimension_numbers<[2], [1], [1], [2], [0, 0, 0, 1, 1, 2], [0], [0]>} : vector<4x8x32xf32>, vector<4x32x8xf32>, vector<4x8x8xf32> -> vector<4x8x8xf32>
    "tpu.trace_stop"() : () -> ()
    %c0_19 = arith.constant 0 : index
    %c0_20 = arith.constant 0 : index
    %c0_21 = arith.constant 0 : index
    %17 = vector.load %arg7[%c0_19, %c0_20, %c0_21] : memref<4x1x8xf32, #tpu.memory_space<vmem>>, vector<4x1x8xf32>
    %18 = vector.broadcast %17 : vector<4x1x8xf32> to vector<4x8x8xf32>
    %19 = arith.addf %16, %18 : vector<4x8x8xf32>
    %cst_22 = arith.constant 0.353553385 : f32
    %20 = vector.broadcast %cst_22 : f32 to vector<4x8x8xf32>
    %21 = arith.mulf %9, %20 : vector<4x8x8xf32>
    "tpu.trace_start"() <{level = 10 : i32, message = "hqd,hkd->hqk"}> : () -> ()
    %cst_23 = arith.constant dense<0.000000e+00> : vector<4x8x8xf32>
    %22 = tpu.matmul %21, %14, %cst_23 {dimension_numbers = #tpu.dot_dimension_numbers<[2], [2], [1], [1], [0, 0, 0, 1, 1, 1], [0], [0]>} : vector<4x8x8xf32>, vector<4x8x8xf32>, vector<4x8x8xf32> -> vector<4x8x8xf32>
    "tpu.trace_stop"() : () -> ()
    %23 = tpu.iota {dimensions = array<i32: 0>} : vector<8x8xi32>
    %24 = tpu.iota {dimensions = array<i32: 1>} : vector<8x8xi32>
    %25 = arith.cmpi sge, %23, %24 : vector<8x8xi32>
    %cst_24 = arith.constant 0.000000e+00 : f32
    %cst_25 = arith.constant -1.000000e+30 : f32
    %26 = vector.broadcast %cst_24 : f32 to vector<8x8xf32>
    %27 = vector.broadcast %cst_25 : f32 to vector<8x8xf32>
    %28 = arith.select %25, %26, %27 : vector<8x8xi1>, vector<8x8xf32>
    %29 = vector.shape_cast %28 : vector<8x8xf32> to vector<1x8x8xf32>
    %30 = vector.broadcast %29 : vector<1x8x8xf32> to vector<4x8x8xf32>
    %31 = arith.addf %22, %30 : vector<4x8x8xf32>
    %cst_26 = arith.constant dense<0xFF800000> : vector<4x8xf32>
    %32 = vector.multi_reduction <maximumf>, %31, %cst_26 [2] : vector<4x8x8xf32> to vector<4x8xf32>
    %33 = vector.shape_cast %32 : vector<4x8xf32> to vector<4x8x1xf32>
    %34 = vector.broadcast %33 : vector<4x8x1xf32> to vector<4x8x8xf32>
    %35 = arith.subf %31, %34 : vector<4x8x8xf32>
    %36 = math.exp %35 : vector<4x8x8xf32>
    %cst_27 = arith.constant dense<0.000000e+00> : vector<4x8xf32>
    %37 = vector.multi_reduction <add>, %36, %cst_27 [2] : vector<4x8x8xf32> to vector<4x8xf32>
    %38 = vector.shape_cast %37 : vector<4x8xf32> to vector<4x8x1xf32>
    %39 = tpu.reciprocal %38 {approx = true} : vector<4x8x1xf32> -> vector<4x8x1xf32>
    %40 = vector.broadcast %39 : vector<4x8x1xf32> to vector<4x8x8xf32>
    %41 = arith.mulf %36, %40 : vector<4x8x8xf32>
    "tpu.trace_start"() <{level = 10 : i32, message = "hqk,hkd->hqd"}> : () -> ()
    %cst_28 = arith.constant dense<0.000000e+00> : vector<4x8x8xf32>
    %42 = tpu.matmul %41, %19, %cst_28 {dimension_numbers = #tpu.dot_dimension_numbers<[2], [1], [1], [2], [0, 0, 0, 1, 1, 2], [0], [0]>} : vector<4x8x8xf32>, vector<4x8x8xf32>, vector<4x8x8xf32> -> vector<4x8x8xf32>
    "tpu.trace_stop"() : () -> ()
    %c0_29 = arith.constant 0 : index
    %c0_30 = arith.constant 0 : index
    %c0_31 = arith.constant 0 : index
    %43 = vector.load %arg8[%c0_29, %c0_30, %c0_31] : memref<4x8x32xf32, #tpu.memory_space<vmem>>, vector<4x8x32xf32>
    "tpu.trace_start"() <{level = 10 : i32, message = "htd,hdc->htc"}> : () -> ()
    %cst_32 = arith.constant dense<0.000000e+00> : vector<4x8x32xf32>
    %44 = tpu.matmul %42, %43, %cst_32 {dimension_numbers = #tpu.dot_dimension_numbers<[2], [1], [1], [2], [0, 0, 0, 1, 1, 2], [0], [0]>} : vector<4x8x8xf32>, vector<4x8x32xf32>, vector<4x8x32xf32> -> vector<4x8x32xf32>
    "tpu.trace_stop"() : () -> ()
    %cst_33 = arith.constant dense<0.000000e+00> : vector<8x32xf32>
    %45 = vector.multi_reduction <add>, %44, %cst_33 [0] : vector<4x8x32xf32> to vector<8x32xf32>
    %c0_34 = arith.constant 0 : index
    %c0_35 = arith.constant 0 : index
    %46 = vector.load %arg9[%c0_34, %c0_35] : memref<1x32xf32, #tpu.memory_space<vmem>>, vector<1x32xf32>
    %47 = vector.broadcast %46 : vector<1x32xf32> to vector<8x32xf32>
    %48 = arith.addf %45, %47 : vector<8x32xf32>
    %c0_36 = arith.constant 0 : index
    %c0_37 = arith.constant 0 : index
    %c0_38 = arith.constant 0 : index
    %49 = vector.load %arg10[%c0_36, %c0_37, %c0_38] : memref<1x8x32xf32, #tpu.memory_space<vmem>>, vector<1x8x32xf32>
    %50 = vector.shape_cast %49 : vector<1x8x32xf32> to vector<8x32xf32>
    %51 = vector.shape_cast %48 : vector<8x32xf32> to vector<1x8x32xf32>
    tpu.vector_store %arg10[%c0_36, %c0_37, %c0_38], %51 {strides = array<i32>} : memref<1x8x32xf32, #tpu.memory_space<vmem>>, vector<1x8x32xf32>,
    return
  }
  func.func @transform_0(%arg0: i32) -> (i32, i32, i32) {
    %c0_i32 = arith.constant 0 : i32
    %c0_i32_0 = arith.constant 0 : i32
    %c0_i32_1 = arith.constant 0 : i32
    return %arg0, %c0_i32, %c0_i32_0 : i32, i32, i32
  }
  func.func @transform_1(%arg0: i32) -> (i32, i32, i32) {
    %c0_i32 = arith.constant 0 : i32
    %c0_i32_0 = arith.constant 0 : i32
    %c0_i32_1 = arith.constant 0 : i32
    %c0_i32_2 = arith.constant 0 : i32
    return %c0_i32, %c0_i32_0, %c0_i32_1 : i32, i32, i32
  }
  func.func @transform_2(%arg0: i32) -> (i32, i32, i32) {
    %c0_i32 = arith.constant 0 : i32
    %c0_i32_0 = arith.constant 0 : i32
    %c0_i32_1 = arith.constant 0 : i32
    %c0_i32_2 = arith.constant 0 : i32
    return %c0_i32, %c0_i32_0, %c0_i32_1 : i32, i32, i32
  }
  func.func @transform_3(%arg0: i32) -> (i32, i32, i32) {
    %c0_i32 = arith.constant 0 : i32
    %c0_i32_0 = arith.constant 0 : i32
    %c0_i32_1 = arith.constant 0 : i32
    %c0_i32_2 = arith.constant 0 : i32
    return %c0_i32, %c0_i32_0, %c0_i32_1 : i32, i32, i32
  }
  func.func @transform_4(%arg0: i32) -> (i32, i32, i32) {
    %c0_i32 = arith.constant 0 : i32
    %c0_i32_0 = arith.constant 0 : i32
    %c0_i32_1 = arith.constant 0 : i32
    %c0_i32_2 = arith.constant 0 : i32
    return %c0_i32, %c0_i32_0, %c0_i32_1 : i32, i32, i32
  }
  func.func @transform_5(%arg0: i32) -> (i32, i32, i32) {
    %c0_i32 = arith.constant 0 : i32
    %c0_i32_0 = arith.constant 0 : i32
    %c0_i32_1 = arith.constant 0 : i32
    %c0_i32_2 = arith.constant 0 : i32
    return %c0_i32, %c0_i32_0, %c0_i32_1 : i32, i32, i32
  }
  func.func @transform_6(%arg0: i32) -> (i32, i32, i32) {
    %c0_i32 = arith.constant 0 : i32
    %c0_i32_0 = arith.constant 0 : i32
    %c0_i32_1 = arith.constant 0 : i32
    %c0_i32_2 = arith.constant 0 : i32
    return %c0_i32, %c0_i32_0, %c0_i32_1 : i32, i32, i32
  }
  func.func @transform_7(%arg0: i32) -> (i32, i32, i32) {
    %c0_i32 = arith.constant 0 : i32
    %c0_i32_0 = arith.constant 0 : i32
    %c0_i32_1 = arith.constant 0 : i32
    %c0_i32_2 = arith.constant 0 : i32
    return %c0_i32, %c0_i32_0, %c0_i32_1 : i32, i32, i32
  }
  func.func @transform_8(%arg0: i32) -> (i32, i32) {
    %c0_i32 = arith.constant 0 : i32
    %c0_i32_0 = arith.constant 0 : i32
    %c0_i32_1 = arith.constant 0 : i32
    return %c0_i32, %c0_i32_0 : i32, i32
  }
  func.func @transform_9(%arg0: i32) -> (i32, i32, i32) {
    %c0_i32 = arith.constant 0 : i32
    %c0_i32_0 = arith.constant 0 : i32
    %c0_i32_1 = arith.constant 0 : i32
    return %arg0, %c0_i32, %c0_i32_0 : i32, i32, i32
  }
}

</mosaic_0001>

<llo_original>
// kernel: causal_self_attention.1
$region0: #{causal_self_attention.1}
  #allocation0 [shape = 'u32[]', space=smem, size = 0x4, offset = 0x4, fixed_abs, tag = 'smem constant byte address 0x4 - core index']
  #allocation1 [shape = 'u32[72,128]{1,0:T(1,128)}', space=vmem, size = 0x9000, scoped, tag = 'internal scratch']
  %s0 = inlined_call_operand.vmem [shape: f32[2,8,32], index: 0, kind: input, shape index: {}]
  %s1 = inlined_call_operand.vmem [shape: f32[4,32,8], index: 1, kind: input, shape index: {}]
  %s2 = inlined_call_operand.vmem [shape: f32[4,32,8], index: 2, kind: input, shape index: {}]
  %s3 = inlined_call_operand.vmem [shape: f32[4,32,8], index: 3, kind: input, shape index: {}]
  %s4 = inlined_call_operand.vmem [shape: f32[4,1,8], index: 4, kind: input, shape index: {}]
  %s5 = inlined_call_operand.vmem [shape: f32[4,1,8], index: 5, kind: input, shape index: {}]
  %s6 = inlined_call_operand.vmem [shape: f32[4,1,8], index: 6, kind: input, shape index: {}]
  %s7 = inlined_call_operand.vmem [shape: f32[4,8,32], index: 7, kind: input, shape index: {}]
  %s8 = inlined_call_operand.vmem [shape: f32[1,32], index: 8, kind: input, shape index: {}]
  %s9 = inlined_call_operand.hbm [shape: f32[2,8,32], index: 9, kind: output, shape index: {}]
  %s10 = sld [smem:[#allocation0]]
  $region69: #{causal_self_attention.1} parent=0
    _
  %s12 = ssub.s32 1, %s10
  %s13 = scalar_select 0, %s12, %s10
  $region1: #{causal_self_attention.1} parent=0
    #allocation2 [shape = 'u8[8192]{0}', space=vmem, size = 0x2000, scoped, tag = 'output window, operand 0']
    #allocation3 [shape = 's32[2]{0}', space=sflag, size = 0x8, scoped, tag = 'scoped memory for causal_self_attention.1']
    %14 = vsyncpa [#allocation3], 0
    %s15 = scalar_lea.sflag [#allocation3], 1
    %16 = vsyncpa %s15, 0
    loop: start=0, step=1, limit=4
    $region2: #{causal_self_attention.1} parent=1 // loop_pre_header
      _
    $region3: #{causal_self_attention.1} parent=1 // loop_header
      %s18 = sphi 0, %s22
      %p19 = scmp.ge.s32.totalorder %s18, 4
      %s28 = sphi 0, %s30
      %s31 = sphi 0, %s28
      %s32 = sphi 0, %s31
      %s48 = sphi 0, %s32
      %s52 = sphi 0, %s52
      %s54 = sphi 0, %s52
      %s55 = sphi 0, %s54
      %s69 = sphi 0, %s55
      %s73 = sphi 0, %s73
      %s75 = sphi 0, %s73
      %s76 = sphi 0, %s75
      %s90 = sphi 0, %s76
      %s94 = sphi 0, %s94
      %s96 = sphi 0, %s94
      %s97 = sphi 0, %s96
      %s111 = sphi 0, %s97
      %s115 = sphi 0, %s115
      %s117 = sphi 0, %s115
      %s118 = sphi 0, %s117
      %s132 = sphi 0, %s118
      %s136 = sphi 0, %s136
      %s138 = sphi 0, %s136
      %s139 = sphi 0, %s138
      %s153 = sphi 0, %s139
      %s157 = sphi 0, %s157
      %s159 = sphi 0, %s157
      %s160 = sphi 0, %s159
      %s174 = sphi 0, %s160
      %s178 = sphi 0, %s178
      %s180 = sphi 0, %s178
      %s181 = sphi 0, %s180
      %s195 = sphi 0, %s181
      %s199 = sphi 0, %s199
      %s201 = sphi 0, %s199
      %s202 = sphi 0, %s201
      %s216 = sphi 0, %s202
      %s222 = sphi 0, %s224
      %s225 = sphi 0, %s222
      %s226 = sphi 0, %s225
      %s242 = sphi 0, %s226
    $region4: #{causal_self_attention.1} parent=1 // loop_header_branch
      %21 = sbr.rel (%p19) target = $region8
    $region5: #{causal_self_attention.1} parent=1 // loop_body
      %s23 = ssub.s32 %s18, 1
      %s24 = ssub.s32 %s18, 2
      %s25 = sadd.s32 %s18, 1
      %s26 = ssub.s32 %s18, %s25
      %p27 = scmp.eq.s32.totalorder %s26, 0
      %s29 = sadd.s32 %s28, 1
      %s30 = scalar_select %p27, %s28, %s29
      %p33 = pneg %p27
      %p34 = scmp.eq.s32.totalorder %s18, 1
      %p35 = por %p33, %p34
      %p36 = scmp.ne.s32.totalorder %s28, %s31
      %p37 = scmp.eq.s32.totalorder %s18, 0
      %p38 = por %p36, %p37
      %p39 = scmp.ne.s32.totalorder %s28, %s31
      %p40 = scmp.eq.s32.totalorder %s23, 1
      %p41 = por %p39, %p40
      %p42 = scmp.ne.s32.totalorder %s31, %s32
      %p43 = scmp.eq.s32.totalorder %s23, 0
      %p44 = por %p42, %p43
      %p45 = scmp.ne.s32.totalorder %s31, %s32
      %p46 = scmp.eq.s32.totalorder %s24, 1
      %p47 = por %p45, %p46
      %p49 = scmp.ne.s32.totalorder %s32, %s48
      %p50 = scmp.eq.s32.totalorder %s24, 0
      %p51 = por %p49, %p50
      %s53 = sadd.s32 %s52, 1
      %p56 = scmp.eq.s32.totalorder %s18, 1
      %p57 = scmp.ne.s32.totalorder %s52, %s54
      %p58 = scmp.eq.s32.totalorder %s18, 0
      %p59 = por %p57, %p58
      %p60 = scmp.ne.s32.totalorder %s52, %s54
      %p61 = scmp.eq.s32.totalorder %s23, 1
      %p62 = por %p60, %p61
      %p63 = scmp.ne.s32.totalorder %s54, %s55
      %p64 = scmp.eq.s32.totalorder %s23, 0
      %p65 = por %p63, %p64
      %p66 = scmp.ne.s32.totalorder %s54, %s55
      %p67 = scmp.eq.s32.totalorder %s24, 1
      %p68 = por %p66, %p67
      %p70 = scmp.ne.s32.totalorder %s55, %s69
      %p71 = scmp.eq.s32.totalorder %s24, 0
      %p72 = por %p70, %p71
      %s74 = sadd.s32 %s73, 1
      %p77 = scmp.eq.s32.totalorder %s18, 1
      %p78 = scmp.ne.s32.totalorder %s73, %s75
      %p79 = scmp.eq.s32.totalorder %s18, 0
      %p80 = por %p78, %p79
      %p81 = scmp.ne.s32.totalorder %s73, %s75
      %p82 = scmp.eq.s32.totalorder %s23, 1
      %p83 = por %p81, %p82
      %p84 = scmp.ne.s32.totalorder %s75, %s76
      %p85 = scmp.eq.s32.totalorder %s23, 0
      %p86 = por %p84, %p85
      %p87 = scmp.ne.s32.totalorder %s75, %s76
      %p88 = scmp.eq.s32.totalorder %s24, 1
      %p89 = por %p87, %p88
      %p91 = scmp.ne.s32.totalorder %s76, %s90
      %p92 = scmp.eq.s32.totalorder %s24, 0
      %p93 = por %p91, %p92
      %s95 = sadd.s32 %s94, 1
      %p98 = scmp.eq.s32.totalorder %s18, 1
      %p99 = scmp.ne.s32.totalorder %s94, %s96
      %p100 = scmp.eq.s32.totalorder %s18, 0
      %p101 = por %p99, %p100
      %p102 = scmp.ne.s32.totalorder %s94, %s96
      %p103 = scmp.eq.s32.totalorder %s23, 1
      %p104 = por %p102, %p103
      %p105 = scmp.ne.s32.totalorder %s96, %s97
      %p106 = scmp.eq.s32.totalorder %s23, 0
      %p107 = por %p105, %p106
      %p108 = scmp.ne.s32.totalorder %s96, %s97
      %p109 = scmp.eq.s32.totalorder %s24, 1
      %p110 = por %p108, %p109
      %p112 = scmp.ne.s32.totalorder %s97, %s111
      %p113 = scmp.eq.s32.totalorder %s24, 0
      %p114 = por %p112, %p113
      %s116 = sadd.s32 %s115, 1
      %p119 = scmp.eq.s32.totalorder %s18, 1
      %p120 = scmp.ne.s32.totalorder %s115, %s117
      %p121 = scmp.eq.s32.totalorder %s18, 0
      %p122 = por %p120, %p121
      %p123 = scmp.ne.s32.totalorder %s115, %s117
      %p124 = scmp.eq.s32.totalorder %s23, 1
      %p125 = por %p123, %p124
      %p126 = scmp.ne.s32.totalorder %s117, %s118
      %p127 = scmp.eq.s32.totalorder %s23, 0
      %p128 = por %p126, %p127
      %p129 = scmp.ne.s32.totalorder %s117, %s118
      %p130 = scmp.eq.s32.totalorder %s24, 1
      %p131 = por %p129, %p130
      %p133 = scmp.ne.s32.totalorder %s118, %s132
      %p134 = scmp.eq.s32.totalorder %s24, 0
      %p135 = por %p133, %p134
      %s137 = sadd.s32 %s136, 1
      %p140 = scmp.eq.s32.totalorder %s18, 1
      %p141 = scmp.ne.s32.totalorder %s136, %s138
      %p142 = scmp.eq.s32.totalorder %s18, 0
      %p143 = por %p141, %p142
      %p144 = scmp.ne.s32.totalorder %s136, %s138
      %p145 = scmp.eq.s32.totalorder %s23, 1
      %p146 = por %p144, %p145
      %p147 = scmp.ne.s32.totalorder %s138, %s139
      %p148 = scmp.eq.s32.totalorder %s23, 0
      %p149 = por %p147, %p148
      %p150 = scmp.ne.s32.totalorder %s138, %s139
      %p151 = scmp.eq.s32.totalorder %s24, 1
      %p152 = por %p150, %p151
      %p154 = scmp.ne.s32.totalorder %s139, %s153
      %p155 = scmp.eq.s32.totalorder %s24, 0
      %p156 = por %p154, %p155
      %s158 = sadd.s32 %s157, 1
      %p161 = scmp.eq.s32.totalorder %s18, 1
      %p162 = scmp.ne.s32.totalorder %s157, %s159
      %p163 = scmp.eq.s32.totalorder %s18, 0
      %p164 = por %p162, %p163
      %p165 = scmp.ne.s32.totalorder %s157, %s159
      %p166 = scmp.eq.s32.totalorder %s23, 1
      %p167 = por %p165, %p166
      %p168 = scmp.ne.s32.totalorder %s159, %s160
      %p169 = scmp.eq.s32.totalorder %s23, 0
      %p170 = por %p168, %p169
      %p171 = scmp.ne.s32.totalorder %s159, %s160
      %p172 = scmp.eq.s32.totalorder %s24, 1
      %p173 = por %p171, %p172
      %p175 = scmp.ne.s32.totalorder %s160, %s174
      %p176 = scmp.eq.s32.totalorder %s24, 0
      %p177 = por %p175, %p176
      %s179 = sadd.s32 %s178, 1
      %p182 = scmp.eq.s32.totalorder %s18, 1
      %p183 = scmp.ne.s32.totalorder %s178, %s180
      %p184 = scmp.eq.s32.totalorder %s18, 0
      %p185 = por %p183, %p184
      %p186 = scmp.ne.s32.totalorder %s178, %s180
      %p187 = scmp.eq.s32.totalorder %s23, 1
      %p188 = por %p186, %p187
      %p189 = scmp.ne.s32.totalorder %s180, %s181
      %p190 = scmp.eq.s32.totalorder %s23, 0
      %p191 = por %p189, %p190
      %p192 = scmp.ne.s32.totalorder %s180, %s181
      %p193 = scmp.eq.s32.totalorder %s24, 1
      %p194 = por %p192, %p193
      %p196 = scmp.ne.s32.totalorder %s181, %s195
      %p197 = scmp.eq.s32.totalorder %s24, 0
      %p198 = por %p196, %p197
      %s200 = sadd.s32 %s199, 1
      %p203 = scmp.eq.s32.totalorder %s18, 1
      %p204 = scmp.ne.s32.totalorder %s199, %s201
      %p205 = scmp.eq.s32.totalorder %s18, 0
      %p206 = por %p204, %p205
      %p207 = scmp.ne.s32.totalorder %s199, %s201
      %p208 = scmp.eq.s32.totalorder %s23, 1
      %p209 = por %p207, %p208
      %p210 = scmp.ne.s32.totalorder %s201, %s202
      %p211 = scmp.eq.s32.totalorder %s23, 0
      %p212 = por %p210, %p211
      %p213 = scmp.ne.s32.totalorder %s201, %s202
      %p214 = scmp.eq.s32.totalorder %s24, 1
      %p215 = por %p213, %p214
      %p217 = scmp.ne.s32.totalorder %s202, %s216
      %p218 = scmp.eq.s32.totalorder %s24, 0
      %p219 = por %p217, %p218
      %s220 = ssub.s32 %s18, %s25
      %p221 = scmp.eq.s32.totalorder %s220, 0
      %s223 = sadd.s32 %s222, 1
      %s224 = scalar_select %p221, %s222, %s223
      %p227 = pneg %p221
      %p228 = scmp.eq.s32.totalorder %s18, 1
      %p229 = por %p227, %p228
      %p230 = scmp.ne.s32.totalorder %s222, %s225
      %p231 = scmp.eq.s32.totalorder %s18, 0
      %p232 = por %p230, %p231
      %p233 = scmp.ne.s32.totalorder %s222, %s225
      %p234 = scmp.eq.s32.totalorder %s23, 1
      %p235 = por %p233, %p234
      %p236 = scmp.ne.s32.totalorder %s225, %s226
      %p237 = scmp.eq.s32.totalorder %s23, 0
      %p238 = por %p236, %p237
      %p239 = scmp.ne.s32.totalorder %s225, %s226
      %p240 = scmp.eq.s32.totalorder %s24, 1
      %p241 = por %p239, %p240
      %p243 = scmp.ne.s32.totalorder %s226, %s242
      %p244 = scmp.eq.s32.totalorder %s24, 0
      %p245 = por %p243, %p244
      %p246 = scmp.le.s32.totalorder 1, %s18
      %p247 = scmp.lt.s32.totalorder %s18, 3
      %p248 = pnand %p246, %p247
      %p249 = pneg %p248
      // Predicated region
      $region9: #{causal_self_attention.1} parent=5 // pred_check
        _
      $region10: #{causal_self_attention.1} parent=5 // pred_check_branch
        %251 = sbr.rel (%p248) target = $region12
      $region11: #{causal_self_attention.1} parent=5 // pred_region
        %s252 = ssub.s32 %s18, 1
        // Predicated region
        $region13: #{causal_self_attention.1} parent=11 // pred_check
          %p253 = pneg %p65
        $region14: #{causal_self_attention.1} parent=11 // pred_check_branch
          %255 = sbr.rel (%p253) target = $region16
        $region15: #{causal_self_attention.1} parent=11 // pred_region
          _
        $region16: #{causal_self_attention.1} parent=11 // pred_fallthru
          _
        // Predicated region
        $region17: #{causal_self_attention.1} parent=11 // pred_check
          %p256 = pneg %p86
        $region18: #{causal_self_attention.1} parent=11 // pred_check_branch
          %258 = sbr.rel (%p256) target = $region20
        $region19: #{causal_self_attention.1} parent=11 // pred_region
          _
        $region20: #{causal_self_attention.1} parent=11 // pred_fallthru
          _
        // Predicated region
        $region21: #{causal_self_attention.1} parent=11 // pred_check
          %p259 = pneg %p107
        $region22: #{causal_self_attention.1} parent=11 // pred_check_branch
          %261 = sbr.rel (%p259) target = $region24
        $region23: #{causal_self_attention.1} parent=11 // pred_region
          _
        $region24: #{causal_self_attention.1} parent=11 // pred_fallthru
          _
        // Predicated region
        $region25: #{causal_self_attention.1} parent=11 // pred_check
          %p262 = pneg %p128
        $region26: #{causal_self_attention.1} parent=11 // pred_check_branch
          %264 = sbr.rel (%p262) target = $region28
        $region27: #{causal_self_attention.1} parent=11 // pred_region
          _
        $region28: #{causal_self_attention.1} parent=11 // pred_fallthru
          _
        // Predicated region
        $region29: #{causal_self_attention.1} parent=11 // pred_check
          %p265 = pneg %p149
        $region30: #{causal_self_attention.1} parent=11 // pred_check_branch
          %267 = sbr.rel (%p265) target = $region32
        $region31: #{causal_self_attention.1} parent=11 // pred_region
          _
        $region32: #{causal_self_attention.1} parent=11 // pred_fallthru
          _
        // Predicated region
        $region33: #{causal_self_attention.1} parent=11 // pred_check
          %p268 = pneg %p170
        $region34: #{causal_self_attention.1} parent=11 // pred_check_branch
          %270 = sbr.rel (%p268) target = $region36
        $region35: #{causal_self_attention.1} parent=11 // pred_region
          _
        $region36: #{causal_self_attention.1} parent=11 // pred_fallthru
          _
        // Predicated region
        $region37: #{causal_self_attention.1} parent=11 // pred_check
          %p271 = pneg %p191
        $region38: #{causal_self_attention.1} parent=11 // pred_check_branch
          %273 = sbr.rel (%p271) target = $region40
        $region39: #{causal_self_attention.1} parent=11 // pred_region
          _
        $region40: #{causal_self_attention.1} parent=11 // pred_fallthru
          _
        // Predicated region
        $region41: #{causal_self_attention.1} parent=11 // pred_check
          %p274 = pneg %p212
        $region42: #{causal_self_attention.1} parent=11 // pred_check_branch
          %276 = sbr.rel (%p274) target = $region44
        $region43: #{causal_self_attention.1} parent=11 // pred_region
          _
        $region44: #{causal_self_attention.1} parent=11 // pred_fallthru
          _
      $region12: #{causal_self_attention.1} parent=5 // pred_fallthru
        _
      %p277 = scmp.lt.s32.totalorder %s18, 2
      // Predicated region
      $region45: #{causal_self_attention.1} parent=5 // pred_check
        %p278 = pneg %p277
      $region46: #{causal_self_attention.1} parent=5 // pred_check_branch
        %280 = sbr.rel (%p278) target = $region48
      $region47: #{causal_self_attention.1} parent=5 // pred_region
        // Predicated region
        $region49: #{causal_self_attention.1} parent=47 // pred_check
          %p281 = pneg %p38
        $region50: #{causal_self_attention.1} parent=47 // pred_check_branch
          %283 = sbr.rel (%p281) target = $region52
        $region51: #{causal_self_attention.1} parent=47 // pred_region
          %p284 = scmp.lt.s32.totalorder %s18, 1
          %s285 = scalar_select %p284, %s18, 1
          %s286 = smul.addr %s285, 8
          %s287 = scalar_lea.vmem %s0, %s286
        $region52: #{causal_self_attention.1} parent=47 // pred_fallthru
          _
      $region48: #{causal_self_attention.1} parent=5 // pred_fallthru
        _
      %p288 = scmp.le.s32.totalorder 1, %s18
      %p289 = scmp.lt.s32.totalorder %s18, 3
      %p290 = pnand %p288, %p289
      %p291 = pneg %p290
      // Predicated region
      $region53: #{causal_self_attention.1} parent=5 // pred_check
        _
      $region54: #{causal_self_attention.1} parent=5 // pred_check_branch
        %293 = sbr.rel (%p290) target = $region56
      $region55: #{causal_self_attention.1} parent=5 // pred_region
        %s294 = ssub.s32 %s18, 1
        %p295 = scmp.lt.s32.totalorder %s23, 1
        %s296 = scalar_select %p295, %s23, 1
        %s297 = smul.addr %s296, 8
        %s298 = scalar_lea.vmem %s0, %s297
        %p299 = pneg %p44
        %p300 = pneg %p41
        %p301 = pneg %p65
        %p302 = pneg %p62
        %p303 = pneg %p86
        %p304 = pneg %p83
        %p305 = pneg %p107
        %p306 = pneg %p104
        %p307 = pneg %p128
        %p308 = pneg %p125
        %p309 = pneg %p149
        %p310 = pneg %p146
        %p311 = pneg %p170
        %p312 = pneg %p167
        %p313 = pneg %p191
        %p314 = pneg %p188
        %p315 = pneg %p212
        %p316 = pneg %p209
        %p317 = pneg %p238
        %p318 = pneg %p235
        %s319 = sand.u32 %s225, 1
        %s320 = scalar_lea.sflag [#allocation3], %s319
        %s321 = sand.u32 %s225, 1
        %s322 = smul.addr %s321, 8
        %s323 = scalar_lea.vmem [#allocation2], %s322
        %p324 = scmp.lt.s32.totalorder %s23, 1
        %s325 = scalar_select %p324, %s23, 1
        %s326 = smul.addr %s325, 8
        %s327 = scalar_lea.vmem %s0, %s326
        %v328 = vld [vmem:[%s327] sm:$0xff]
        %v329 = vld [vmem:[%s1] sm:$0xff]
        %v330 = vld [vmem:[%s1 + $0x8] sm:$0xff]
        %v331 = vld [vmem:[%s1 + $0x10] sm:$0xff]
        %v332 = vld [vmem:[%s1 + $0x18] sm:$0xff]
        %v333 = vld [vmem:[%s1 + $0x20] sm:$0xff]
        %v334 = vld [vmem:[%s1 + $0x28] sm:$0xff]
        %v335 = vld [vmem:[%s1 + $0x30] sm:$0xff]
        %v336 = vld [vmem:[%s1 + $0x38] sm:$0xff]
        %v337 = vld [vmem:[%s1 + $0x40] sm:$0xff]
        %v338 = vld [vmem:[%s1 + $0x48] sm:$0xff]
        %v339 = vld [vmem:[%s1 + $0x50] sm:$0xff]
        %v340 = vld [vmem:[%s1 + $0x58] sm:$0xff]
        %v341 = vld [vmem:[%s1 + $0x60] sm:$0xff]
        %v342 = vld [vmem:[%s1 + $0x68] sm:$0xff]
        %v343 = vld [vmem:[%s1 + $0x70] sm:$0xff]
        %v344 = vld [vmem:[%s1 + $0x78] sm:$0xff]
        %v345 = vld [vmem:[%s4] sm:$0x1]
        %v346 = vld [vmem:[%s4 + $0x1] sm:$0x1]
        %v347 = vld [vmem:[%s4 + $0x2] sm:$0x1]
        %v348 = vld [vmem:[%s4 + $0x3] sm:$0x1]
        %v353 = vperm.slane %v345, 0
        %v354 = vperm.slane %v346, 0
        %v355 = vperm.slane %v347, 0
        %v356 = vperm.slane %v348, 0
        %vm361 = vcmask 261120
        %v363 = vsel %vm361, %v328, 0
        %365 = vmatpush.msra.mxu0 0.0
        %366 = vmatpush.msra.mxu0 0.0
        %367 = vmatpush.msra.mxu0 0.0
        %368 = vmatpush.msra.mxu0 0.0
        %369 = vmatpush.msra.mxu0 0.0
        %370 = vmatpush.msra.mxu0 0.0
        %371 = vmatpush.msra.mxu0 0.0
        %372 = vmatpush.msra.mxu0 0.0
        %373 = vmatpush.msra.mxu0 0.0
        %374 = vmatpush.msra.mxu0 0.0
        %375 = vmatpush.msra.mxu0 0.0
        %376 = vmatpush.msra.mxu0 0.0
        %377 = vmatpush.msra.mxu0 %v332
        %378 = vmatpush.msra.mxu0 %v331
        %379 = vmatpush.msra.mxu0 %v330
        %380 = vmatpush.msra.mxu0 %v329
        %381 = vmatmul.f32.gmra.mxu0 %v363
        %v382 = vpop.f32.mrf.mxu0
        %v383 = vadd.f32 %v353, %v382
        %384 = vdwg.mxu0
        %385 = vmatpush.msra.mxu0 0.0
        %386 = vmatpush.msra.mxu0 0.0
        %387 = vmatpush.msra.mxu0 0.0
        %388 = vmatpush.msra.mxu0 0.0
        %389 = vmatpush.msra.mxu0 0.0
        %390 = vmatpush.msra.mxu0 0.0
        %391 = vmatpush.msra.mxu0 0.0
        %392 = vmatpush.msra.mxu0 0.0
        %393 = vmatpush.msra.mxu0 0.0
        %394 = vmatpush.msra.mxu0 0.0
        %395 = vmatpush.msra.mxu0 0.0
        %396 = vmatpush.msra.mxu0 0.0
        %397 = vmatpush.msra.mxu0 %v336
        %398 = vmatpush.msra.mxu0 %v335
        %399 = vmatpush.msra.mxu0 %v334
        %400 = vmatpush.msra.mxu0 %v333
        %401 = vmatmul.f32.gmra.mxu0 %v363
        %v402 = vpop.f32.mrf.mxu0
        %v403 = vadd.f32 %v354, %v402
        %404 = vdwg.mxu0
        %405 = vmatpush.msra.mxu0 0.0
        %406 = vmatpush.msra.mxu0 0.0
        %407 = vmatpush.msra.mxu0 0.0
        %408 = vmatpush.msra.mxu0 0.0
        %409 = vmatpush.msra.mxu0 0.0
        %410 = vmatpush.msra.mxu0 0.0
        %411 = vmatpush.msra.mxu0 0.0
        %412 = vmatpush.msra.mxu0 0.0
        %413 = vmatpush.msra.mxu0 0.0
        %414 = vmatpush.msra.mxu0 0.0
        %415 = vmatpush.msra.mxu0 0.0
        %416 = vmatpush.msra.mxu0 0.0
        %417 = vmatpush.msra.mxu0 %v340
        %418 = vmatpush.msra.mxu0 %v339
        %419 = vmatpush.msra.mxu0 %v338
        %420 = vmatpush.msra.mxu0 %v337
        %421 = vmatmul.f32.gmra.mxu0 %v363
        %v422 = vpop.f32.mrf.mxu0
        %v423 = vadd.f32 %v355, %v422
        %424 = vdwg.mxu0
        %425 = vmatpush.msra.mxu0 0.0
        %426 = vmatpush.msra.mxu0 0.0
        %427 = vmatpush.msra.mxu0 0.0
        %428 = vmatpush.msra.mxu0 0.0
        %429 = vmatpush.msra.mxu0 0.0
        %430 = vmatpush.msra.mxu0 0.0
        %431 = vmatpush.msra.mxu0 0.0
        %432 = vmatpush.msra.mxu0 0.0
        %433 = vmatpush.msra.mxu0 0.0
        %434 = vmatpush.msra.mxu0 0.0
        %435 = vmatpush.msra.mxu0 0.0
        %436 = vmatpush.msra.mxu0 0.0
        %437 = vmatpush.msra.mxu0 %v344
        %438 = vmatpush.msra.mxu0 %v343
        %439 = vmatpush.msra.mxu0 %v342
        %440 = vmatpush.msra.mxu0 %v341
        %441 = vmatmul.f32.gmra.mxu0 %v363
        %v442 = vpop.f32.mrf.mxu0
        %v443 = vadd.f32 %v356, %v442
        %444 = vdwg.mxu0
        %v445 = vld [vmem:[%s2] sm:$0xff]
        %v446 = vld [vmem:[%s2 + $0x8] sm:$0xff]
        %v447 = vld [vmem:[%s2 + $0x10] sm:$0xff]
        %v448 = vld [vmem:[%s2 + $0x18] sm:$0xff]
        %v449 = vld [vmem:[%s2 + $0x20] sm:$0xff]
        %v450 = vld [vmem:[%s2 + $0x28] sm:$0xff]
        %v451 = vld [vmem:[%s2 + $0x30] sm:$0xff]
        %v452 = vld [vmem:[%s2 + $0x38] sm:$0xff]
        %v453 = vld [vmem:[%s2 + $0x40] sm:$0xff]
        %v454 = vld [vmem:[%s2 + $0x48] sm:$0xff]
        %v455 = vld [vmem:[%s2 + $0x50] sm:$0xff]
        %v456 = vld [vmem:[%s2 + $0x58] sm:$0xff]
        %v457 = vld [vmem:[%s2 + $0x60] sm:$0xff]
        %v458 = vld [vmem:[%s2 + $0x68] sm:$0xff]
        %v459 = vld [vmem:[%s2 + $0x70] sm:$0xff]
        %v460 = vld [vmem:[%s2 + $0x78] sm:$0xff]
        %v461 = vld [vmem:[%s5] sm:$0x1]
        %v462 = vld [vmem:[%s5 + $0x1] sm:$0x1]
        %v463 = vld [vmem:[%s5 + $0x2] sm:$0x1]
        %v464 = vld [vmem:[%s5 + $0x3] sm:$0x1]
        %v469 = vperm.slane %v461, 0
        %v470 = vperm.slane %v462, 0
        %v471 = vperm.slane %v463, 0
        %v472 = vperm.slane %v464, 0
        %477 = vmatpush.msra.mxu0 0.0
        %478 = vmatpush.msra.mxu0 0.0
        %479 = vmatpush.msra.mxu0 0.0
        %480 = vmatpush.msra.mxu0 0.0
        %481 = vmatpush.msra.mxu0 0.0
        %482 = vmatpush.msra.mxu0 0.0
        %483 = vmatpush.msra.mxu0 0.0
        %484 = vmatpush.msra.mxu0 0.0
        %485 = vmatpush.msra.mxu0 0.0
        %486 = vmatpush.msra.mxu0 0.0
        %487 = vmatpush.msra.mxu0 0.0
        %488 = vmatpush.msra.mxu0 0.0
        %489 = vmatpush.msra.mxu0 %v448
        %490 = vmatpush.msra.mxu0 %v447
        %491 = vmatpush.msra.mxu0 %v446
        %492 = vmatpush.msra.mxu0 %v445
        %493 = vmatmul.f32.gmra.mxu0 %v363
        %v494 = vpop.f32.mrf.mxu0
        %v495 = vadd.f32 %v469, %v494
        %496 = vdwg.mxu0
        %497 = vmatpush.msra.mxu0 0.0
        %498 = vmatpush.msra.mxu0 0.0
        %499 = vmatpush.msra.mxu0 0.0
        %500 = vmatpush.msra.mxu0 0.0
        %501 = vmatpush.msra.mxu0 0.0
        %502 = vmatpush.msra.mxu0 0.0
        %503 = vmatpush.msra.mxu0 0.0
        %504 = vmatpush.msra.mxu0 0.0
        %505 = vmatpush.msra.mxu0 0.0
        %506 = vmatpush.msra.mxu0 0.0
        %507 = vmatpush.msra.mxu0 0.0
        %508 = vmatpush.msra.mxu0 0.0
        %509 = vmatpush.msra.mxu0 %v452
        %510 = vmatpush.msra.mxu0 %v451
        %511 = vmatpush.msra.mxu0 %v450
        %512 = vmatpush.msra.mxu0 %v449
        %513 = vmatmul.f32.gmra.mxu0 %v363
        %v514 = vpop.f32.mrf.mxu0
        %v515 = vadd.f32 %v470, %v514
        %516 = vdwg.mxu0
        %517 = vmatpush.msra.mxu0 0.0
        %518 = vmatpush.msra.mxu0 0.0
        %519 = vmatpush.msra.mxu0 0.0
        %520 = vmatpush.msra.mxu0 0.0
        %521 = vmatpush.msra.mxu0 0.0
        %522 = vmatpush.msra.mxu0 0.0
        %523 = vmatpush.msra.mxu0 0.0
        %524 = vmatpush.msra.mxu0 0.0
        %525 = vmatpush.msra.mxu0 0.0
        %526 = vmatpush.msra.mxu0 0.0
        %527 = vmatpush.msra.mxu0 0.0
        %528 = vmatpush.msra.mxu0 0.0
        %529 = vmatpush.msra.mxu0 %v456
        %530 = vmatpush.msra.mxu0 %v455
        %531 = vmatpush.msra.mxu0 %v454
        %532 = vmatpush.msra.mxu0 %v453
        %533 = vmatmul.f32.gmra.mxu0 %v363
        %v534 = vpop.f32.mrf.mxu0
        %v535 = vadd.f32 %v471, %v534
        %536 = vdwg.mxu0
        %537 = vmatpush.msra.mxu0 0.0
        %538 = vmatpush.msra.mxu0 0.0
        %539 = vmatpush.msra.mxu0 0.0
        %540 = vmatpush.msra.mxu0 0.0
        %541 = vmatpush.msra.mxu0 0.0
        %542 = vmatpush.msra.mxu0 0.0
        %543 = vmatpush.msra.mxu0 0.0
        %544 = vmatpush.msra.mxu0 0.0
        %545 = vmatpush.msra.mxu0 0.0
        %546 = vmatpush.msra.mxu0 0.0
        %547 = vmatpush.msra.mxu0 0.0
        %548 = vmatpush.msra.mxu0 0.0
        %549 = vmatpush.msra.mxu0 %v460
        %550 = vmatpush.msra.mxu0 %v459
        %551 = vmatpush.msra.mxu0 %v458
        %552 = vmatpush.msra.mxu0 %v457
        %553 = vmatmul.f32.gmra.mxu0 %v363
        %v554 = vpop.f32.mrf.mxu0
        %v555 = vadd.f32 %v472, %v554
        %556 = vdwg.mxu0
        %v557 = vld [vmem:[%s3] sm:$0xff]
        %v558 = vld [vmem:[%s3 + $0x8] sm:$0xff]
        %v559 = vld [vmem:[%s3 + $0x10] sm:$0xff]
        %v560 = vld [vmem:[%s3 + $0x18] sm:$0xff]
        %v561 = vld [vmem:[%s3 + $0x20] sm:$0xff]
        %v562 = vld [vmem:[%s3 + $0x28] sm:$0xff]
        %v563 = vld [vmem:[%s3 + $0x30] sm:$0xff]
        %v564 = vld [vmem:[%s3 + $0x38] sm:$0xff]
        %v565 = vld [vmem:[%s3 + $0x40] sm:$0xff]
        %v566 = vld [vmem:[%s3 + $0x48] sm:$0xff]
        %v567 = vld [vmem:[%s3 + $0x50] sm:$0xff]
        %v568 = vld [vmem:[%s3 + $0x58] sm:$0xff]
        %v569 = vld [vmem:[%s3 + $0x60] sm:$0xff]
        %v570 = vld [vmem:[%s3 + $0x68] sm:$0xff]
        %v571 = vld [vmem:[%s3 + $0x70] sm:$0xff]
        %v572 = vld [vmem:[%s3 + $0x78] sm:$0xff]
        %v573 = vld [vmem:[%s6] sm:$0x1]
        %v574 = vld [vmem:[%s6 + $0x1] sm:$0x1]
        %v575 = vld [vmem:[%s6 + $0x2] sm:$0x1]
        %v576 = vld [vmem:[%s6 + $0x3] sm:$0x1]
        %v581 = vperm.slane %v573, 0
        %v582 = vperm.slane %v574, 0
        %v583 = vperm.slane %v575, 0
        %v584 = vperm.slane %v576, 0
        %589 = vmatpush.msra.mxu0 0.0
        %590 = vmatpush.msra.mxu0 0.0
        %591 = vmatpush.msra.mxu0 0.0
        %592 = vmatpush.msra.mxu0 0.0
        %593 = vmatpush.msra.mxu0 0.0
        %594 = vmatpush.msra.mxu0 0.0
        %595 = vmatpush.msra.mxu0 0.0
        %596 = vmatpush.msra.mxu0 0.0
        %597 = vmatpush.msra.mxu0 0.0
        %598 = vmatpush.msra.mxu0 0.0
        %599 = vmatpush.msra.mxu0 0.0
        %600 = vmatpush.msra.mxu0 0.0
        %601 = vmatpush.msra.mxu0 %v560
        %602 = vmatpush.msra.mxu0 %v559
        %603 = vmatpush.msra.mxu0 %v558
        %604 = vmatpush.msra.mxu0 %v557
        %605 = vmatmul.f32.gmra.mxu0 %v363
        %v606 = vpop.f32.mrf.mxu0
        %v607 = vadd.f32 %v581, %v606
        %608 = vdwg.mxu0
        %609 = vmatpush.msra.mxu0 0.0
        %610 = vmatpush.msra.mxu0 0.0
        %611 = vmatpush.msra.mxu0 0.0
        %612 = vmatpush.msra.mxu0 0.0
        %613 = vmatpush.msra.mxu0 0.0
        %614 = vmatpush.msra.mxu0 0.0
        %615 = vmatpush.msra.mxu0 0.0
        %616 = vmatpush.msra.mxu0 0.0
        %617 = vmatpush.msra.mxu0 0.0
        %618 = vmatpush.msra.mxu0 0.0
        %619 = vmatpush.msra.mxu0 0.0
        %620 = vmatpush.msra.mxu0 0.0
        %621 = vmatpush.msra.mxu0 %v564
        %622 = vmatpush.msra.mxu0 %v563
        %623 = vmatpush.msra.mxu0 %v562
        %624 = vmatpush.msra.mxu0 %v561
        %625 = vmatmul.f32.gmra.mxu0 %v363
        %v626 = vpop.f32.mrf.mxu0
        %v627 = vadd.f32 %v582, %v626
        %628 = vdwg.mxu0
        %629 = vmatpush.msra.mxu0 0.0
        %630 = vmatpush.msra.mxu0 0.0
        %631 = vmatpush.msra.mxu0 0.0
        %632 = vmatpush.msra.mxu0 0.0
        %633 = vmatpush.msra.mxu0 0.0
        %634 = vmatpush.msra.mxu0 0.0
        %635 = vmatpush.msra.mxu0 0.0
        %636 = vmatpush.msra.mxu0 0.0
        %637 = vmatpush.msra.mxu0 0.0
        %638 = vmatpush.msra.mxu0 0.0
        %639 = vmatpush.msra.mxu0 0.0
        %640 = vmatpush.msra.mxu0 0.0
        %641 = vmatpush.msra.mxu0 %v568
        %642 = vmatpush.msra.mxu0 %v567
        %643 = vmatpush.msra.mxu0 %v566
        %644 = vmatpush.msra.mxu0 %v565
        %645 = vmatmul.f32.gmra.mxu0 %v363
        %v646 = vpop.f32.mrf.mxu0
        %v647 = vadd.f32 %v583, %v646
        %648 = vdwg.mxu0
        %649 = vmatpush.msra.mxu0 0.0
        %650 = vmatpush.msra.mxu0 0.0
        %651 = vmatpush.msra.mxu0 0.0
        %652 = vmatpush.msra.mxu0 0.0
        %653 = vmatpush.msra.mxu0 0.0
        %654 = vmatpush.msra.mxu0 0.0
        %655 = vmatpush.msra.mxu0 0.0
        %656 = vmatpush.msra.mxu0 0.0
        %657 = vmatpush.msra.mxu0 0.0
        %658 = vmatpush.msra.mxu0 0.0
        %659 = vmatpush.msra.mxu0 0.0
        %660 = vmatpush.msra.mxu0 0.0
        %661 = vmatpush.msra.mxu0 %v572
        %662 = vmatpush.msra.mxu0 %v571
        %663 = vmatpush.msra.mxu0 %v570
        %664 = vmatpush.msra.mxu0 %v569
        %665 = vmatmul.f32.gmra.mxu0 %v363
        %v666 = vpop.f32.mrf.mxu0
        %v667 = vadd.f32 %v584, %v666
        %668 = vdwg.mxu0
        %v669 = vmul.f32 %v383, 0.35355338
        %v670 = vmul.f32 %v403, 0.35355338
        %v671 = vmul.f32 %v423, 0.35355338
        %v672 = vmul.f32 %v443, 0.35355338
        %v673 = vlaneseq
        %v674 = vshrl.u32 %v673, 7
        %v675 = vlaneseq
        %v676 = vand.u32 %v675, 127
        %vm677 = vcmp.ge.s32.totalorder %v674, %v676
        %v678 = vsel %vm677, 0.0, -1e+30
        %vm679 = vcmask 64512
        %v681 = vsel %vm679, %v669, 0
        %v684 = vsel %vm679, %v495, 0
        %686 = vmatpush.xpose.msra.mxu0 0.0
        %687 = vmatpush.xpose.msra.mxu0 0.0
        %688 = vmatpush.xpose.msra.mxu0 0.0
        %689 = vmatpush.xpose.msra.mxu0 0.0
        %690 = vmatpush.xpose.msra.mxu0 0.0
        %691 = vmatpush.xpose.msra.mxu0 0.0
        %692 = vmatpush.xpose.msra.mxu0 0.0
        %693 = vmatpush.xpose.msra.mxu0 0.0
        %694 = vmatpush.xpose.msra.mxu0 0.0
        %695 = vmatpush.xpose.msra.mxu0 0.0
        %696 = vmatpush.xpose.msra.mxu0 0.0
        %697 = vmatpush.xpose.msra.mxu0 0.0
        %698 = vmatpush.xpose.msra.mxu0 0.0
        %699 = vmatpush.xpose.msra.mxu0 0.0
        %700 = vmatpush.xpose.msra.mxu0 0.0
        %701 = vmatpush.xpose.msra.mxu0 %v684
        %702 = vmatmul.f32.gmra.mxu0 %v681
        %v703 = vpop.f32.mrf.mxu0
        %v704 = vadd.f32 %v678, %v703
        %705 = vdwg.mxu0
        %v707 = vsel %vm679, %v670, 0
        %v710 = vsel %vm679, %v515, 0
        %712 = vmatpush.xpose.msra.mxu0 0.0
        %713 = vmatpush.xpose.msra.mxu0 0.0
        %714 = vmatpush.xpose.msra.mxu0 0.0
        %715 = vmatpush.xpose.msra.mxu0 0.0
        %716 = vmatpush.xpose.msra.mxu0 0.0
        %717 = vmatpush.xpose.msra.mxu0 0.0
        %718 = vmatpush.xpose.msra.mxu0 0.0
        %719 = vmatpush.xpose.msra.mxu0 0.0
        %720 = vmatpush.xpose.msra.mxu0 0.0
        %721 = vmatpush.xpose.msra.mxu0 0.0
        %722 = vmatpush.xpose.msra.mxu0 0.0
        %723 = vmatpush.xpose.msra.mxu0 0.0
        %724 = vmatpush.xpose.msra.mxu0 0.0
        %725 = vmatpush.xpose.msra.mxu0 0.0
        %726 = vmatpush.xpose.msra.mxu0 0.0
        %727 = vmatpush.xpose.msra.mxu0 %v710
        %728 = vmatmul.f32.gmra.mxu0 %v707
        %v729 = vpop.f32.mrf.mxu0
        %v730 = vadd.f32 %v678, %v729
        %731 = vdwg.mxu0
        %v733 = vsel %vm679, %v671, 0
        %v736 = vsel %vm679, %v535, 0
        %738 = vmatpush.xpose.msra.mxu0 0.0
        %739 = vmatpush.xpose.msra.mxu0 0.0
        %740 = vmatpush.xpose.msra.mxu0 0.0
        %741 = vmatpush.xpose.msra.mxu0 0.0
        %742 = vmatpush.xpose.msra.mxu0 0.0
        %743 = vmatpush.xpose.msra.mxu0 0.0
        %744 = vmatpush.xpose.msra.mxu0 0.0
        %745 = vmatpush.xpose.msra.mxu0 0.0
        %746 = vmatpush.xpose.msra.mxu0 0.0
        %747 = vmatpush.xpose.msra.mxu0 0.0
        %748 = vmatpush.xpose.msra.mxu0 0.0
        %749 = vmatpush.xpose.msra.mxu0 0.0
        %750 = vmatpush.xpose.msra.mxu0 0.0
        %751 = vmatpush.xpose.msra.mxu0 0.0
        %752 = vmatpush.xpose.msra.mxu0 0.0
        %753 = vmatpush.xpose.msra.mxu0 %v736
        %754 = vmatmul.f32.gmra.mxu0 %v733
        %v755 = vpop.f32.mrf.mxu0
        %v756 = vadd.f32 %v678, %v755
        %757 = vdwg.mxu0
        %v759 = vsel %vm679, %v672, 0
        %v762 = vsel %vm679, %v555, 0
        %764 = vmatpush.xpose.msra.mxu0 0.0
        %765 = vmatpush.xpose.msra.mxu0 0.0
        %766 = vmatpush.xpose.msra.mxu0 0.0
        %767 = vmatpush.xpose.msra.mxu0 0.0
        %768 = vmatpush.xpose.msra.mxu0 0.0
        %769 = vmatpush.xpose.msra.mxu0 0.0
        %770 = vmatpush.xpose.msra.mxu0 0.0
        %771 = vmatpush.xpose.msra.mxu0 0.0
        %772 = vmatpush.xpose.msra.mxu0 0.0
        %773 = vmatpush.xpose.msra.mxu0 0.0
        %774 = vmatpush.xpose.msra.mxu0 0.0
        %775 = vmatpush.xpose.msra.mxu0 0.0
        %776 = vmatpush.xpose.msra.mxu0 0.0
        %777 = vmatpush.xpose.msra.mxu0 0.0
        %778 = vmatpush.xpose.msra.mxu0 0.0
        %779 = vmatpush.xpose.msra.mxu0 %v762
        %780 = vmatmul.f32.gmra.mxu0 %v759
        %v781 = vpop.f32.mrf.mxu0
        %v782 = vadd.f32 %v678, %v781
        %783 = vdwg.mxu0
        %v784 = vsel %vm679, %v704, -inf
        %785 = vmax.xlane.f32.xlu0 %v784
        %v786 = vpop.xlane.xlu0 %785
        %v787 = vsel %vm679, %v730, -inf
        %788 = vmax.xlane.f32.xlu0 %v787
        %v789 = vpop.xlane.xlu0 %788
        %v790 = vsel %vm679, %v756, -inf
        %791 = vmax.xlane.f32.xlu0 %v790
        %v792 = vpop.xlane.xlu0 %791
        %v793 = vsel %vm679, %v782, -inf
        %794 = vmax.xlane.f32.xlu0 %v793
        %v795 = vpop.xlane.xlu0 %794
        %v796 = vsub.f32 %v704, %v786
        %v797 = vsub.f32 %v730, %v789
        %v798 = vsub.f32 %v756, %v792
        %v799 = vsub.f32 %v782, %v795
        %v800 = vmul.f32 %v796, 1.442695
        %v801 = vpow.pop %v800
        %v802 = vmul.f32 %v797, 1.442695
        %v803 = vpow.pop %v802
        %v804 = vmul.f32 %v798, 1.442695
        %v805 = vpow.pop %v804
        %v806 = vmul.f32 %v799, 1.442695
        %v807 = vpow.pop %v806
        %v808 = vsel %vm679, %v801, 0.0
        %809 = vadd.xlane.f32.xlu0 %v808
        %v810 = vpop.xlane.xlu0 %809
        %v811 = vsel %vm679, %v803, 0.0
        %812 = vadd.xlane.f32.xlu0 %v811
        %v813 = vpop.xlane.xlu0 %812
        %v814 = vsel %vm679, %v805, 0.0
        %815 = vadd.xlane.f32.xlu0 %v814
        %v816 = vpop.xlane.xlu0 %815
        %v817 = vsel %vm679, %v807, 0.0
        %818 = vadd.xlane.f32.xlu0 %v817
        %v819 = vpop.xlane.xlu0 %818
        %v820 = vrcp.pop %v810
        %v821 = vrcp.pop %v813
        %v822 = vrcp.pop %v816
        %v823 = vrcp.pop %v819
        %v824 = vmul.f32 %v801, %v820
        %v825 = vmul.f32 %v803, %v821
        %v826 = vmul.f32 %v805, %v822
        %v827 = vmul.f32 %v807, %v823
        %v829 = vsel %vm679, %v824, 0
        %831 = vmatpush.msra.mxu0 0.0
        %832 = vmatpush.msra.mxu0 0.0
        %833 = vmatpush.msra.mxu0 0.0
        %834 = vmatpush.msra.mxu0 0.0
        %835 = vmatpush.msra.mxu0 0.0
        %836 = vmatpush.msra.mxu0 0.0
        %837 = vmatpush.msra.mxu0 0.0
        %838 = vmatpush.msra.mxu0 0.0
        %839 = vmatpush.msra.mxu0 0.0
        %840 = vmatpush.msra.mxu0 0.0
        %841 = vmatpush.msra.mxu0 0.0
        %842 = vmatpush.msra.mxu0 0.0
        %843 = vmatpush.msra.mxu0 0.0
        %844 = vmatpush.msra.mxu0 0.0
        %845 = vmatpush.msra.mxu0 0.0
        %846 = vmatpush.msra.mxu0 %v607
        %847 = vmatmul.f32.gmra.mxu0 %v829
        %v848 = vpop.f32.mrf.mxu0
        %v849 = vadd.f32 0.0, %v848
        %850 = vdwg.mxu0
        %v852 = vsel %vm679, %v825, 0
        %854 = vmatpush.msra.mxu0 0.0
        %855 = vmatpush.msra.mxu0 0.0
        %856 = vmatpush.msra.mxu0 0.0
        %857 = vmatpush.msra.mxu0 0.0
        %858 = vmatpush.msra.mxu0 0.0
        %859 = vmatpush.msra.mxu0 0.0
        %860 = vmatpush.msra.mxu0 0.0
        %861 = vmatpush.msra.mxu0 0.0
        %862 = vmatpush.msra.mxu0 0.0
        %863 = vmatpush.msra.mxu0 0.0
        %864 = vmatpush.msra.mxu0 0.0
        %865 = vmatpush.msra.mxu0 0.0
        %866 = vmatpush.msra.mxu0 0.0
        %867 = vmatpush.msra.mxu0 0.0
        %868 = vmatpush.msra.mxu0 0.0
        %869 = vmatpush.msra.mxu0 %v627
        %870 = vmatmul.f32.gmra.mxu0 %v852
        %v871 = vpop.f32.mrf.mxu0
        %v872 = vadd.f32 0.0, %v871
        %873 = vdwg.mxu0
        %v875 = vsel %vm679, %v826, 0
        %877 = vmatpush.msra.mxu0 0.0
        %878 = vmatpush.msra.mxu0 0.0
        %879 = vmatpush.msra.mxu0 0.0
        %880 = vmatpush.msra.mxu0 0.0
        %881 = vmatpush.msra.mxu0 0.0
        %882 = vmatpush.msra.mxu0 0.0
        %883 = vmatpush.msra.mxu0 0.0
        %884 = vmatpush.msra.mxu0 0.0
        %885 = vmatpush.msra.mxu0 0.0
        %886 = vmatpush.msra.mxu0 0.0
        %887 = vmatpush.msra.mxu0 0.0
        %888 = vmatpush.msra.mxu0 0.0
        %889 = vmatpush.msra.mxu0 0.0
        %890 = vmatpush.msra.mxu0 0.0
        %891 = vmatpush.msra.mxu0 0.0
        %892 = vmatpush.msra.mxu0 %v647
        %893 = vmatmul.f32.gmra.mxu0 %v875
        %v894 = vpop.f32.mrf.mxu0
        %v895 = vadd.f32 0.0, %v894
        %896 = vdwg.mxu0
        %v898 = vsel %vm679, %v827, 0
        %900 = vmatpush.msra.mxu0 0.0
        %901 = vmatpush.msra.mxu0 0.0
        %902 = vmatpush.msra.mxu0 0.0
        %903 = vmatpush.msra.mxu0 0.0
        %904 = vmatpush.msra.mxu0 0.0
        %905 = vmatpush.msra.mxu0 0.0
        %906 = vmatpush.msra.mxu0 0.0
        %907 = vmatpush.msra.mxu0 0.0
        %908 = vmatpush.msra.mxu0 0.0
        %909 = vmatpush.msra.mxu0 0.0
        %910 = vmatpush.msra.mxu0 0.0
        %911 = vmatpush.msra.mxu0 0.0
        %912 = vmatpush.msra.mxu0 0.0
        %913 = vmatpush.msra.mxu0 0.0
        %914 = vmatpush.msra.mxu0 0.0
        %915 = vmatpush.msra.mxu0 %v667
        %916 = vmatmul.f32.gmra.mxu0 %v898
        %v917 = vpop.f32.mrf.mxu0
        %v918 = vadd.f32 0.0, %v917
        %919 = vdwg.mxu0
        %v920 = vld [vmem:[%s7] sm:$0xff]
        %v921 = vld [vmem:[%s7 + $0x8] sm:$0xff]
        %v922 = vld [vmem:[%s7 + $0x10] sm:$0xff]
        %v923 = vld [vmem:[%s7 + $0x18] sm:$0xff]
        %v925 = vsel %vm679, %v849, 0
        %927 = vmatpush.msra.mxu0 0.0
        %928 = vmatpush.msra.mxu0 0.0
        %929 = vmatpush.msra.mxu0 0.0
        %930 = vmatpush.msra.mxu0 0.0
        %931 = vmatpush.msra.mxu0 0.0
        %932 = vmatpush.msra.mxu0 0.0
        %933 = vmatpush.msra.mxu0 0.0
        %934 = vmatpush.msra.mxu0 0.0
        %935 = vmatpush.msra.mxu0 0.0
        %936 = vmatpush.msra.mxu0 0.0
        %937 = vmatpush.msra.mxu0 0.0
        %938 = vmatpush.msra.mxu0 0.0
        %939 = vmatpush.msra.mxu0 0.0
        %940 = vmatpush.msra.mxu0 0.0
        %941 = vmatpush.msra.mxu0 0.0
        %942 = vmatpush.msra.mxu0 %v920
        %943 = vmatmul.f32.gmra.mxu0 %v925
        %v944 = vpop.f32.mrf.mxu0
        %v945 = vadd.f32 0.0, %v944
        %946 = vdwg.mxu0
        %v948 = vsel %vm679, %v872, 0
        %950 = vmatpush.msra.mxu0 0.0
        %951 = vmatpush.msra.mxu0 0.0
        %952 = vmatpush.msra.mxu0 0.0
        %953 = vmatpush.msra.mxu0 0.0
        %954 = vmatpush.msra.mxu0 0.0
        %955 = vmatpush.msra.mxu0 0.0
        %956 = vmatpush.msra.mxu0 0.0
        %957 = vmatpush.msra.mxu0 0.0
        %958 = vmatpush.msra.mxu0 0.0
        %959 = vmatpush.msra.mxu0 0.0
        %960 = vmatpush.msra.mxu0 0.0
        %961 = vmatpush.msra.mxu0 0.0
        %962 = vmatpush.msra.mxu0 0.0
        %963 = vmatpush.msra.mxu0 0.0
        %964 = vmatpush.msra.mxu0 0.0
        %965 = vmatpush.msra.mxu0 %v921
        %966 = vmatmul.f32.gmra.mxu0 %v948
        %v967 = vpop.f32.mrf.mxu0
        %v968 = vadd.f32 0.0, %v967
        %969 = vdwg.mxu0
        %v971 = vsel %vm679, %v895, 0
        %973 = vmatpush.msra.mxu0 0.0
        %974 = vmatpush.msra.mxu0 0.0
        %975 = vmatpush.msra.mxu0 0.0
        %976 = vmatpush.msra.mxu0 0.0
        %977 = vmatpush.msra.mxu0 0.0
        %978 = vmatpush.msra.mxu0 0.0
        %979 = vmatpush.msra.mxu0 0.0
        %980 = vmatpush.msra.mxu0 0.0
        %981 = vmatpush.msra.mxu0 0.0
        %982 = vmatpush.msra.mxu0 0.0
        %983 = vmatpush.msra.mxu0 0.0
        %984 = vmatpush.msra.mxu0 0.0
        %985 = vmatpush.msra.mxu0 0.0
        %986 = vmatpush.msra.mxu0 0.0
        %987 = vmatpush.msra.mxu0 0.0
        %988 = vmatpush.msra.mxu0 %v922
        %989 = vmatmul.f32.gmra.mxu0 %v971
        %v990 = vpop.f32.mrf.mxu0
        %v991 = vadd.f32 0.0, %v990
        %992 = vdwg.mxu0
        %v994 = vsel %vm679, %v918, 0
        %996 = vmatpush.msra.mxu0 0.0
        %997 = vmatpush.msra.mxu0 0.0
        %998 = vmatpush.msra.mxu0 0.0
        %999 = vmatpush.msra.mxu0 0.0
        %1000 = vmatpush.msra.mxu0 0.0
        %1001 = vmatpush.msra.mxu0 0.0
        %1002 = vmatpush.msra.mxu0 0.0
        %1003 = vmatpush.msra.mxu0 0.0
        %1004 = vmatpush.msra.mxu0 0.0
        %1005 = vmatpush.msra.mxu0 0.0
        %1006 = vmatpush.msra.mxu0 0.0
        %1007 = vmatpush.msra.mxu0 0.0
        %1008 = vmatpush.msra.mxu0 0.0
        %1009 = vmatpush.msra.mxu0 0.0
        %1010 = vmatpush.msra.mxu0 0.0
        %1011 = vmatpush.msra.mxu0 %v923
        %1012 = vmatmul.f32.gmra.mxu0 %v994
        %v1013 = vpop.f32.mrf.mxu0
        %v1014 = vadd.f32 0.0, %v1013
        %1015 = vdwg.mxu0
        %v1016 = vsel %vm361, %v945, 0.0
        %v1017 = vsel %vm361, %v968, 0.0
        %v1018 = vadd.f32 %v1016, %v1017
        %v1019 = vsel %vm361, %v991, 0.0
        %v1020 = vadd.f32 %v1018, %v1019
        %v1021 = vsel %vm361, %v1014, 0.0
        %v1022 = vadd.f32 %v1020, %v1021
        %v1023 = vld [vmem:[%s8] sm:$0x1]
        %v1025 = vperm.slane %v1023, 0
        %v1027 = vadd.f32 %v1022, %v1025
        %1028 = vst.msk [vmem:[%s323] sm:$0xff] %vm361, %v1027
        %s1029 = sand.u32 %s225, 1
        %s1030 = scalar_lea.sflag [#allocation3], %s1029
        %s1031 = sand.u32 %s225, 1
        %s1032 = smul.addr %s1031, 8
        %s1033 = scalar_lea.vmem [#allocation2], %s1032
        // Predicated region
        $region57: #{causal_self_attention.1} parent=55 // pred_check
          %p1034 = pneg %p235
        $region58: #{causal_self_attention.1} parent=55 // pred_check_branch
          %1036 = sbr.rel (%p1034) target = $region60
        $region59: #{causal_self_attention.1} parent=55 // pred_region
          %1038 = vsyncadd %s1030, 0
          %s1039 = smul.addr %s23, 8
          %s1040 = scalar_lea.hbm %s9, %s1039
          %s1042 = sshll.u32 %s1033, 4
          %s1043 = int_to_ptr.vmem [resolvable:$true] %s1042
          %s1044 = sshll.u32 %s1040, 4
          %s1045 = int_to_ptr.hbm [resolvable:$true] %s1044
          %1047 = dma.vmem_to_hbm [thread:$0]  %s1043, 128, %s1045, %s1030
        $region60: #{causal_self_attention.1} parent=55 // pred_fallthru
          _
      $region56: #{causal_self_attention.1} parent=5 // pred_fallthru
        _
      %p1048 = scmp.le.s32.totalorder 2, %s18
      // Predicated region
      $region61: #{causal_self_attention.1} parent=5 // pred_check
        %p1049 = pneg %p1048
      $region62: #{causal_self_attention.1} parent=5 // pred_check_branch
        %1051 = sbr.rel (%p1049) target = $region64
      $region63: #{causal_self_attention.1} parent=5 // pred_region
        %s1052 = ssub.s32 %s18, 2
        // Predicated region
        $region65: #{causal_self_attention.1} parent=63 // pred_check
          %p1053 = pneg %p241
        $region66: #{causal_self_attention.1} parent=63 // pred_check_branch
          %1055 = sbr.rel (%p1053) target = $region68
        $region67: #{causal_self_attention.1} parent=63 // pred_region
          %s1056 = sand.u32 %s226, 1
          %s1057 = scalar_lea.sflag [#allocation3], %s1056
          %s1058 = sand.u32 %s226, 1
          %s1059 = smul.addr %s1058, 8
          %s1060 = scalar_lea.vmem [#allocation2], %s1059
          %1062 = dma.done %s1057, 128
        $region68: #{causal_self_attention.1} parent=63 // pred_fallthru
          _
      $region64: #{causal_self_attention.1} parent=5 // pred_fallthru
        _
    $region6: #{causal_self_attention.1} parent=1 // loop_footer
      %s22 = sadd.s32 1, %s18
    $region7: #{causal_self_attention.1} parent=1 // loop_footer_branch
      %17 = sbr.rel target = $region3
    $region8: #{causal_self_attention.1} parent=1 // loop_exit
      _
    %1063 = vsyncpa [#allocation3], 1
    %s1064 = scalar_lea.sflag [#allocation3], 1
    %1065 = vsyncpa %s1064, 1

</llo_original>
